<compile_context>
chip_gen: v6e
topology: v6e:2x2x1
jax: 0.10.0
libtpu: 0.0.40
codegen_flags: <defaults>
</compile_context>

<pallas_src>
import jax
import jax.numpy as jnp
from jax.experimental import pallas as pl
from jax.experimental.pallas import tpu as pltpu

_LANES = 128
_MAX_TILE_ROWS = 512  # 512*128*4B = 256 KiB per buffer; safe on v5e/v6e/v7x.


def _logreg_kernel(w_ref, b_ref, x_ref, o_ref):
    # w_ref, b_ref: (1, 1) f32 scalars in SMEM
    # x_ref, o_ref: (tile_rows, 128) f32 tiles in VMEM
    w = w_ref[0, 0]
    b = b_ref[0, 0]
    z = x_ref[...] * w + b                      # Linear(1, 1): x @ W^T + b
    p = jnp.exp(-z)                             # EUP transcendental
    o_ref[...] = pl.reciprocal(1.0 + p, approx=True)  # EUP recip, VPU stays free


def logistic_regression(x, weight, bias):
    """x: (N, 1); weight: (1, 1); bias: (1,) -> (N, 1) f32 (sigmoid(x*w + b))."""
    n = x.shape[0]

    # ---- wrapper-side layout plumbing: present a lane-dense (rows, 128) slab.
    rows = max(pl.cdiv(n, _LANES), 1)                 # static Python ints
    tile_rows = min(_MAX_TILE_ROWS, rows)
    rows_pad = pl.cdiv(rows, tile_rows) * tile_rows
    n_pad = rows_pad * _LANES

    xf = x.reshape(n)
    if xf.dtype != jnp.float32:
        xf = xf.astype(jnp.float32)
    if n_pad != n:
        xf = jnp.pad(xf, (0, n_pad - n))              # padded tail is discarded below
    x2d = xf.reshape(rows_pad, _LANES)

    w_smem = jnp.asarray(weight, jnp.float32).reshape(1, 1)
    b_smem = jnp.asarray(bias, jnp.float32).reshape(1, 1)

    grid = (rows_pad // tile_rows,)

    out2d = pl.pallas_call(
        _logreg_kernel,
        out_shape=jax.ShapeDtypeStruct((rows_pad, _LANES), jnp.float32),
        grid_spec=pltpu.PrefetchScalarGridSpec(
            num_scalar_prefetch=0,
            grid=grid,
            in_specs=[
                pl.BlockSpec(memory_space=pltpu.MemorySpace.SMEM),       # weight
                pl.BlockSpec(memory_space=pltpu.MemorySpace.SMEM),       # bias
                pl.BlockSpec((tile_rows, _LANES), lambda i: (i, 0)),     # x slab
            ],
            out_specs=pl.BlockSpec((tile_rows, _LANES), lambda i: (i, 0)),
        ),
        compiler_params=pltpu.CompilerParams(
            dimension_semantics=("parallel",),  # shards rows across TCs on v7x
        ),
    )(w_smem, b_smem, x2d)

    return out2d.reshape(n_pad, 1)[:n]


if __name__ == "__main__":
    # Deterministic parameter init (same shapes as torch.nn.Linear(1, 1, True)).
    key = jax.random.PRNGKey(0)
    k_w, k_b = jax.random.split(key)
    # torch default init: U(-1/sqrt(fan_in), 1/sqrt(fan_in)) with fan_in = 1.
    weight = jax.random.uniform(k_w, (1, 1), jnp.float32, -1.0, 1.0)
    bias = jax.random.uniform(k_b, (1,), jnp.float32, -1.0, 1.0)

    # Input matching the original script: x = np.linspace(0, 10, 200), as (N, 1).
    x = jnp.linspace(0.0, 10.0, 200, dtype=jnp.float32).reshape(200, 1)

    y = logistic_regression(x, weight, bias)
    jax.block_until_ready(y)

    # Cross-check against plain-JAX reference (approx reciprocal -> looser tol).
    y_ref = jax.nn.sigmoid(x @ weight.T + bias)
    assert y.shape == (200, 1)
    assert jnp.allclose(y, y_ref, atol=2e-3, rtol=2e-3), "mismatch vs reference"

    print("KERNEL_OK")
</pallas_src>

<mosaic_0001>
module attributes {stable_mosaic.version = 11 : i64} {
  func.func @_logreg_kernel(%arg0: i32, %arg1: memref<1x1xf32, #tpu.memory_space<smem>>, %arg2: memref<1x1xf32, #tpu.memory_space<smem>>, %arg3: memref<2x128xf32, #tpu.memory_space<vmem>>, %arg4: memref<2x128xf32, #tpu.memory_space<vmem>>) attributes {dimension_semantics = [#tpu.dimension_semantics<parallel>], iteration_bounds = array<i64: 1>, scalar_prefetch = 0 : i64, scratch_operands = 0 : i64, tpu.core_type = #tpu.core_type<tc>, window_params = [{transform_indices = @transform_0, window_bounds = array<i64: 1, 1>}, {transform_indices = @transform_1, window_bounds = array<i64: 1, 1>}, {transform_indices = @transform_2, window_bounds = array<i64: 2, 128>}, {transform_indices = @transform_3, window_bounds = array<i64: 2, 128>}]} {
    %c0 = arith.constant 0 : index
    %c0_0 = arith.constant 0 : index
    %0 = memref.load %arg1[%c0, %c0_0] : memref<1x1xf32, #tpu.memory_space<smem>>
    %c0_1 = arith.constant 0 : index
    %c0_2 = arith.constant 0 : index
    %1 = memref.load %arg2[%c0_1, %c0_2] : memref<1x1xf32, #tpu.memory_space<smem>>
    %c0_3 = arith.constant 0 : index
    %c0_4 = arith.constant 0 : index
    %2 = vector.load %arg3[%c0_3, %c0_4] : memref<2x128xf32, #tpu.memory_space<vmem>>, vector<2x128xf32>
    %3 = vector.broadcast %0 : f32 to vector<2x128xf32>
    %4 = arith.mulf %2, %3 : vector<2x128xf32>
    %5 = vector.broadcast %1 : f32 to vector<2x128xf32>
    %6 = arith.addf %4, %5 : vector<2x128xf32>
    %cst = arith.constant 0.000000e+00 : f32
    %7 = vector.broadcast %cst : f32 to vector<2x128xf32>
    %8 = arith.subf %7, %6 : vector<2x128xf32>
    %9 = math.exp %8 : vector<2x128xf32>
    %cst_5 = arith.constant 1.000000e+00 : f32
    %10 = vector.broadcast %cst_5 : f32 to vector<2x128xf32>
    %11 = arith.addf %10, %9 : vector<2x128xf32>
    %12 = tpu.reciprocal %11 {approx = true} : vector<2x128xf32> -> vector<2x128xf32>
    %c0_6 = arith.constant 0 : index
    %c0_7 = arith.constant 0 : index
    %13 = vector.load %arg4[%c0_6, %c0_7] : memref<2x128xf32, #tpu.memory_space<vmem>>, vector<2x128xf32>
    tpu.vector_store %arg4[%c0_6, %c0_7], %12 {strides = array<i32>} : memref<2x128xf32, #tpu.memory_space<vmem>>, vector<2x128xf32>,
    return
  }
  func.func @transform_0(%arg0: i32) -> (i32, i32) {
    %c0_i32 = arith.constant 0 : i32
    %c0_i32_0 = arith.constant 0 : i32
    %c0_i32_1 = arith.constant 0 : i32
    return %c0_i32, %c0_i32_0 : i32, i32
  }
  func.func @transform_1(%arg0: i32) -> (i32, i32) {
    %c0_i32 = arith.constant 0 : i32
    %c0_i32_0 = arith.constant 0 : i32
    %c0_i32_1 = arith.constant 0 : i32
    return %c0_i32, %c0_i32_0 : i32, i32
  }
  func.func @transform_2(%arg0: i32) -> (i32, i32) {
    %c0_i32 = arith.constant 0 : i32
    %c0_i32_0 = arith.constant 0 : i32
    return %arg0, %c0_i32 : i32, i32
  }
  func.func @transform_3(%arg0: i32) -> (i32, i32) {
    %c0_i32 = arith.constant 0 : i32
    %c0_i32_0 = arith.constant 0 : i32
    return %arg0, %c0_i32 : i32, i32
  }
}

</mosaic_0001>

<llo_original>
// kernel: tpu_custom_call.1
$region0: #{tpu_custom_call.1}
  #allocation0 [shape = 'u32[]', space=smem, size = 0x4, offset = 0x4, fixed_abs, tag = 'smem constant byte address 0x4 - core index']
  #allocation1 [shape = 'u32[144,128]{1,0:T(1,128)}', space=vmem, size = 0x12000, scoped, tag = 'internal scratch']
  #allocation2 [shape = 'f32[1,1]{1,0:T(1,128)S(6)}', space=smem, size = 0x200, scoped, tag = 'scoped memory for tpu_custom_call.1']
  #allocation3 [shape = 'f32[1,1]{1,0:T(1,128)S(6)}', space=smem, size = 0x200, scoped, tag = 'scoped memory for tpu_custom_call.1']
  %s0 = inlined_call_operand.<no memory space> [shape: f32[1,1], index: 0, kind: input, shape index: {}]
  %s1 = inlined_call_operand.<no memory space> [shape: f32[1,1], index: 1, kind: input, shape index: {}]
  %s2 = inlined_call_operand.vmem [shape: f32[2,128], index: 2, kind: input, shape index: {}]
  %s3 = inlined_call_operand.hbm [shape: f32[2,128], index: 3, kind: output, shape index: {}]
  %s4 = sld [smem:[#allocation0]]
  $region22: #{tpu_custom_call.1} parent=0
    _
  %s6 = ssub.s32 1, %s4
  %s7 = scalar_select 0, %s6, %s4
  %8 = sst [smem:[#allocation2]] %s0
  %9 = sst [smem:[#allocation3]] %s1
  $region1: #{tpu_custom_call.1} parent=0
    #allocation4 [shape = 'u8[1024]{0}', space=vmem, size = 0x400, scoped, tag = 'output window, operand 0, single buffered']
    #allocation5 [shape = 's32[1]{0}', space=sflag, size = 0x4, scoped, tag = 'scoped memory for tpu_custom_call.1']
    %10 = vsyncpa [#allocation5], 0
    // Predicated region
    $region2: #{tpu_custom_call.1} parent=1 // pred_check
      _
    $region3: #{tpu_custom_call.1} parent=1 // pred_check_branch
      %12 = sbr.rel (0) target = $region5
    $region4: #{tpu_custom_call.1} parent=1 // pred_region
      _
    $region5: #{tpu_custom_call.1} parent=1 // pred_fallthru
      _
    // Predicated region
    $region6: #{tpu_custom_call.1} parent=1 // pred_check
      _
    $region7: #{tpu_custom_call.1} parent=1 // pred_check_branch
      %14 = sbr.rel (0) target = $region9
    $region8: #{tpu_custom_call.1} parent=1 // pred_region
      _
    $region9: #{tpu_custom_call.1} parent=1 // pred_fallthru
      _
    // Predicated region
    $region10: #{tpu_custom_call.1} parent=1 // pred_check
      _
    $region11: #{tpu_custom_call.1} parent=1 // pred_check_branch
      %16 = sbr.rel (0) target = $region13
    $region12: #{tpu_custom_call.1} parent=1 // pred_region
      _
    $region13: #{tpu_custom_call.1} parent=1 // pred_fallthru
      _
    %s17 = sld [smem:[#allocation2]]
    %s18 = sld [smem:[#allocation3]]
    %v19 = vld [vmem:[%s2] sm:$0x3]
    %v20 = vstv %s17
    %v21 = vmul.f32 %v19, %v20
    %v22 = vstv %s18
    %v23 = vadd.f32 %v21, %v22
    %v24 = vsub.f32 0.0, %v23
    %v25 = vmul.f32 %v24, 1.442695
    %v26 = vpow.pop %v25
    %v27 = vadd.f32 %v26, 1.0
    %v28 = vrcp.pop %v27
    %29 = vst [vmem:[#allocation4] sm:$0x3] %v28
    // Predicated region
    $region14: #{tpu_custom_call.1} parent=1 // pred_check
      _
    $region15: #{tpu_custom_call.1} parent=1 // pred_check_branch
      %31 = sbr.rel (0) target = $region17
    $region16: #{tpu_custom_call.1} parent=1 // pred_region
      %s33 = ssub.s32 32, 32
      %34 = vsyncadd [#allocation5], %s33
      %s36 = sshll.u32 [#allocation4], 4
      %s37 = int_to_ptr.vmem [resolvable:$true] %s36
      %39 = dma.vmem_to_hbm [thread:$0]  %s37, 32, %s3, [#allocation5]
    $region17: #{tpu_custom_call.1} parent=1 // pred_fallthru
      _
    // Predicated region
    $region18: #{tpu_custom_call.1} parent=1 // pred_check
      _
    $region19: #{tpu_custom_call.1} parent=1 // pred_check_branch
      %41 = sbr.rel (0) target = $region21
    $region20: #{tpu_custom_call.1} parent=1 // pred_region
      %42 = dma.done [#allocation5], 32
    $region21: #{tpu_custom_call.1} parent=1 // pred_fallthru
      _
    %43 = vsyncpa [#allocation5], 1

</llo_original>
